<compile_context>
chip_gen: v7x
topology: tpu7x:2x2x1
jax: 0.10.0
libtpu: 0.0.40
codegen_flags: <defaults>
</compile_context>

<pallas_src>
import functools
import math

import jax
import jax.numpy as jnp
from jax import lax
from jax.experimental import pallas as pl
from jax.experimental.pallas import tpu as pltpu

LANE = 128      # TPU lane width (last dim)
SUBLANE = 8     # TPU sublane width (second-to-last dim)


def _round_up(x, m):
    return ((x + m - 1) // m) * m


# ---------------------------------------------------------------------------
# Fused kernel: gather + (dot, softmax, dot) for BOTH sub-models + concat.
# ---------------------------------------------------------------------------
def _fused_concat_kernel(idx_ref,     # VMEM [TB, 1] int32      (batch tile of indices)
                         t1_ref,      # VMEM [N1_pad, D1_pad]   resident table 1
                         at1_ref,     # VMEM [D1_pad, A_pad]    resident anchors_1^T
                         ao1_ref,     # VMEM [A_pad, OUT_pad]   anchors_1 at its out slot
                         t2_ref,      # VMEM [N2_pad, D2_pad]   resident table 2
                         at2_ref,     # VMEM [D2_pad, A_pad]    resident anchors_2^T
                         ao2_ref,     # VMEM [A_pad, OUT_pad]   anchors_2 at its out slot
                         out_ref,     # VMEM [TB, OUT_pad]      concatenated output tile
                         side_ref,    # VMEM [1, 4, A_pad]      [exc1, colsum1, exc2, colsum2]
                         *, a1_real, a2_real, b_real):
    tb = out_ref.shape[0]
    a_pad = side_ref.shape[-1]
    base = pl.program_id(0) * tb

    idx = idx_ref[...]                                              # [TB, 1] int32
    row_ids = base + lax.broadcasted_iota(jnp.int32, (tb, 1), 0)
    row_valid = row_ids < b_real                                    # [TB, 1]

    def one_model(t_ref, at_ref, ao_ref, a_real):
        n_pad = t_ref.shape[0]
        # Fused embedding gather as a one-hot MXU matmul (table is VMEM-resident,
        # so no per-row DMA descriptors; padded index rows just pick row 0 and
        # are masked out of the partial reductions / sliced off the output).
        onehot = (lax.broadcasted_iota(jnp.int32, (tb, n_pad), 1) == idx
                  ).astype(jnp.float32)                             # [TB, N_pad]
        e = jnp.dot(onehot, t_ref[...],
                    preferred_element_type=jnp.float32)             # [TB, D_pad]

        # dots = e @ anchors.T -- anchors pre-transposed in the wrapper (NN dot).
        dots = jnp.dot(e, at_ref[...],
                       preferred_element_type=jnp.float32)          # [TB, A_pad]

        col_valid = lax.broadcasted_iota(jnp.int32, (1, a_pad), 1) < a_real
        dots = jnp.where(col_valid, dots, -jnp.inf)

        # Numerically stable softmax + log-softmax (no log(0) NaNs).
        m = jnp.max(dots, axis=-1, keepdims=True)                   # [TB, 1]
        shifted = dots - m
        ex = jnp.exp(shifted)                                       # 0 on padded cols
        denom = jnp.sum(ex, axis=-1, keepdims=True)
        r = pl.reciprocal(denom, approx=True)                       # EUP vrcp
        r = r * (2.0 - denom * r)                                   # one Newton step
        coeff = ex * r
        log_coeff = shifted - jnp.log(denom)

        # o_vect placed directly at its column slot of the concatenated output.
        vect_slot = jnp.dot(coeff, ao_ref[...],
                            preferred_element_type=jnp.float32)     # [TB, OUT_pad]

        # Lane-dense per-tile partial reductions (finalized in the wrapper).
        p_logp = coeff * jnp.where(col_valid, log_coeff, 0.0)
        p_logp = jnp.where(row_valid, p_logp, 0.0)
        coeff_m = jnp.where(row_valid, coeff, 0.0)
        exc_p = jnp.sum(p_logp, axis=0, keepdims=True)              # [1, A_pad]
        cs_p = jnp.sum(coeff_m, axis=0, keepdims=True)              # [1, A_pad]
        return vect_slot, exc_p, cs_p

    v1, exc1_p, cs1_p = one_model(t1_ref, at1_ref, ao1_ref, a1_real)
    v2, exc2_p, cs2_p = one_model(t2_ref, at2_ref, ao2_ref, a2_real)

    # Fused concat: the two slot matmuls occupy disjoint output columns.
    out_ref[...] = v1 + v2
    # Single side-output store per tile (both models' partials merged).
    side_ref[0] = jnp.concatenate([exc1_p, cs1_p, exc2_p, cs2_p], axis=0)


# ---------------------------------------------------------------------------
# ConcatenateFeatureExtractors.forward
# ---------------------------------------------------------------------------
def concatenate_feature_extractors_forward(o_idxs, params_1, params_2,
                                           invert=False, *,
                                           max_rows_per_tile=1024):
    """Fused Pallas forward of ConcatenateFeatureExtractors.

    params_i = (embedding_table_i, anchors_i).
    Returns (concat(o_vect_1, o_vect_2, -1), (exc1, inc1), (exc2, inc2)).
    """
    emb_1, anc_1 = params_1
    emb_2, anc_2 = params_2
    n1, d1 = emb_1.shape
    a1, d1b = anc_1.shape
    n2, d2 = emb_2.shape
    a2, d2b = anc_2.shape
    assert d1 == d1b and d2 == d2b
    assert o_idxs.ndim in (1, 2), f"bad o_idxs shape {o_idxs.shape}"

    flat_idxs = o_idxs.reshape(-1).astype(jnp.int32)
    b_real = flat_idxs.shape[0]

    # Batch tiling: TB multiple of 8; batches > max_rows_per_tile split into
    # >=2 tiles so the "parallel" axis can shard across v7x's two TensorCores.
    tb = min(_round_up(max_rows_per_tile, SUBLANE), _round_up(b_real, SUBLANE))
    b_pad = _round_up(b_real, tb)
    num_tiles = b_pad // tb

    d1_pad = _round_up(d1, LANE)
    d2_pad = _round_up(d2, LANE)
    n1_pad = _round_up(n1, LANE)
    n2_pad = _round_up(n2, LANE)
    a_pad = _round_up(max(a1, a2), LANE)
    d_out = d1 + d2
    out_pad = _round_up(d_out, LANE)

    # Output column offsets (invert swaps which sub-model is written first).
    off_1, off_2 = (d2, 0) if invert else (0, d1)

    # Lane-padded / pre-arranged parameters (zero padding -> exact results).
    # TODO(synk): for repeated forward calls, hoist this one-time parameter
    # padding/transpose outside the forward so it is not re-materialized.
    t1 = jnp.pad(emb_1, ((0, n1_pad - n1), (0, d1_pad - d1)))
    t2 = jnp.pad(emb_2, ((0, n2_pad - n2), (0, d2_pad - d2)))
    at1 = jnp.pad(anc_1.T, ((0, d1_pad - d1), (0, a_pad - a1)))            # [D1_pad, A_pad]
    at2 = jnp.pad(anc_2.T, ((0, d2_pad - d2), (0, a_pad - a2)))            # [D2_pad, A_pad]
    ao1 = jnp.pad(anc_1, ((0, a_pad - a1), (off_1, out_pad - off_1 - d1)))  # [A_pad, OUT_pad]
    ao2 = jnp.pad(anc_2, ((0, a_pad - a2), (off_2, out_pad - off_2 - d2)))  # [A_pad, OUT_pad]

    idx2d = jnp.pad(flat_idxs, (0, b_pad - b_real)).reshape(b_pad, 1)

    # VMEM budget: resident params + double-buffered batch tiles.
    resident_bytes = 4 * (t1.size + t2.size + at1.size + at2.size + ao1.size + ao2.size)
    tile_bytes = 4 * (tb * (out_pad + 1) + 4 * a_pad)
    if resident_bytes > 24 * 1024 * 1024:
        # TODO(synk): pipelined HBM DMA-gather path for tables too large for VMEM.
        raise NotImplementedError("embedding tables too large for the VMEM-resident path")
    vmem_limit = int(min(64 * 1024 * 1024,
                         max(32 * 1024 * 1024,
                             2 * (resident_bytes + tile_bytes) + (4 << 20))))

    kernel = functools.partial(_fused_concat_kernel,
                               a1_real=a1, a2_real=a2, b_real=b_real)

    out_full, side = pl.pallas_call(
        kernel,
        grid=(num_tiles,),
        in_specs=[
            pl.BlockSpec((tb, 1), lambda i: (i, 0)),              # index tile
            pl.BlockSpec((n1_pad, d1_pad), lambda i: (0, 0)),     # table 1 (resident)
            pl.BlockSpec((d1_pad, a_pad), lambda i: (0, 0)),      # anchors_1^T
            pl.BlockSpec((a_pad, out_pad), lambda i: (0, 0)),     # anchors_1 @ out slot
            pl.BlockSpec((n2_pad, d2_pad), lambda i: (0, 0)),     # table 2 (resident)
            pl.BlockSpec((d2_pad, a_pad), lambda i: (0, 0)),      # anchors_2^T
            pl.BlockSpec((a_pad, out_pad), lambda i: (0, 0)),     # anchors_2 @ out slot
        ],
        out_specs=(
            pl.BlockSpec((tb, out_pad), lambda i: (i, 0)),        # concat tile (lane-dense)
            pl.BlockSpec((1, 4, a_pad), lambda i: (i, 0, 0)),     # merged side partials
        ),
        out_shape=(
            jax.ShapeDtypeStruct((b_pad, out_pad), jnp.float32),
            jax.ShapeDtypeStruct((num_tiles, 4, a_pad), jnp.float32),
        ),
        compiler_params=pltpu.CompilerParams(
            dimension_semantics=("parallel",),
            vmem_limit_bytes=vmem_limit,
        ),
    )(idx2d, t1, at1, ao1, t2, at2, ao2)

    # Single compaction pass on the final concatenated output only.
    out = out_full[:b_real, :d_out].reshape(o_idxs.shape + (d_out,))

    # Tiny finalization (num_tiles x A values) in plain JAX.
    def finalize(exc_row, cs_row, a_real):
        exc = -jnp.sum(side[:, exc_row, :a_real])
        col_sum = jnp.sum(side[:, cs_row, :a_real], axis=0)
        q_k = col_sum / jnp.sum(col_sum)
        inc = -jnp.sum(q_k * jnp.log(jnp.where(q_k > 0, q_k, 1.0)))
        return exc, inc

    exc1, inc1 = finalize(0, 1, a1)
    exc2, inc2 = finalize(2, 3, a2)
    # TODO(synk): cumulative_loss / get_and_reset_loss are stateful across calls
    # in PyTorch; in JAX the caller must accumulate these per-call losses.
    return out, (exc1, inc1), (exc2, inc2)


# ---------------------------------------------------------------------------
# Pure-JAX reference (matches the PyTorch forward semantics).
# ---------------------------------------------------------------------------
def _reference_anchor_forward(o_idxs, embedding_table, anchors):
    e = jnp.take(embedding_table, o_idxs.reshape(-1), axis=0)
    dots = e @ anchors.T
    coeff = jax.nn.softmax(dots, axis=-1)
    vect = coeff @ anchors
    exc = -(coeff * jnp.log(coeff)).sum()
    q_k = coeff.sum(axis=0) / coeff.sum()
    inc = -(q_k * jnp.log(q_k)).sum()
    return vect.reshape(o_idxs.shape + (anchors.shape[1],)), exc, inc


def reference_concat_forward(o_idxs, params_1, params_2, invert=False):
    r1, e1, i1 = _reference_anchor_forward(o_idxs, *params_1)
    r2, e2, i2 = _reference_anchor_forward(o_idxs, *params_2)
    out = jnp.concatenate([r2, r1] if invert else [r1, r2], axis=-1)
    return out, (e1, i1), (e2, i2)


if __name__ == "__main__":
    key = jax.random.PRNGKey(0)
    k1, k2, k3, k4, k5 = jax.random.split(key, 5)

    n_objects = 64
    batch_size, n_neg_p_1 = 2, 7          # 14 rows -> exercises row masking

    # model_1: embedding_dim=32, n_anchors=16 ; model_2: embedding_dim=48, n_anchors=24
    d1_dim, a1_n = 32, 16
    d2_dim, a2_n = 48, 24
    emb_1 = jax.random.normal(k1, (n_objects, d1_dim), dtype=jnp.float32)
    anc_1 = jax.random.normal(k2, (a1_n, d1_dim), dtype=jnp.float32)
    emb_2 = jax.random.normal(k3, (n_objects, d2_dim), dtype=jnp.float32)
    anc_2 = jax.random.normal(k4, (a2_n, d2_dim), dtype=jnp.float32)
    o_idxs = jax.random.randint(k5, (batch_size, n_neg_p_1), 0, n_objects,
                                dtype=jnp.int32)

    out_tol = dict(atol=1e-4, rtol=1e-4)
    loss_tol = dict(atol=1e-3, rtol=1e-4)

    for invert in (False, True):
        # invert=True run also exercises the multi-tile (grid > 1) path.
        max_rows = 8 if invert else 1024
        out, (exc1, inc1), (exc2, inc2) = concatenate_feature_extractors_forward(
            o_idxs, (emb_1, anc_1), (emb_2, anc_2), invert=invert,
            max_rows_per_tile=max_rows)
        jax.block_until_ready((out, exc1, inc1, exc2, inc2))

        ref_out, (rexc1, rinc1), (rexc2, rinc2) = reference_concat_forward(
            o_idxs, (emb_1, anc_1), (emb_2, anc_2), invert=invert)

        assert out.shape == (batch_size, n_neg_p_1, d1_dim + d2_dim)
        assert jnp.allclose(out, ref_out, **out_tol)
        assert jnp.allclose(exc1, rexc1, **loss_tol)
        assert jnp.allclose(inc1, rinc1, **loss_tol)
        assert jnp.allclose(exc2, rexc2, **loss_tol)
        assert jnp.allclose(inc2, rinc2, **loss_tol)

    print("KERNEL_OK")
</pallas_src>

<mosaic_0001>
module attributes {stable_mosaic.version = 11 : i64} {
  func.func @_fused_concat_kernel(%arg0: i32, %arg1: memref<16x1xi32, #tpu.memory_space<vmem>>, %arg2: memref<128x128xf32, #tpu.memory_space<vmem>>, %arg3: memref<128x128xf32, #tpu.memory_space<vmem>>, %arg4: memref<128x128xf32, #tpu.memory_space<vmem>>, %arg5: memref<128x128xf32, #tpu.memory_space<vmem>>, %arg6: memref<128x128xf32, #tpu.memory_space<vmem>>, %arg7: memref<128x128xf32, #tpu.memory_space<vmem>>, %arg8: memref<16x128xf32, #tpu.memory_space<vmem>>, %arg9: memref<1x4x128xf32, #tpu.memory_space<vmem>>) attributes {dimension_semantics = [#tpu.dimension_semantics<parallel>], iteration_bounds = array<i64: 1>, scalar_prefetch = 0 : i64, scratch_operands = 0 : i64, tpu.core_type = #tpu.core_type<tc>, window_params = [{transform_indices = @transform_0, window_bounds = array<i64: 16, 1>}, {pipeline_mode = #tpu.pipeline_mode<synchronous>, transform_indices = @transform_1, window_bounds = array<i64: 128, 128>}, {pipeline_mode = #tpu.pipeline_mode<synchronous>, transform_indices = @transform_2, window_bounds = array<i64: 128, 128>}, {pipeline_mode = #tpu.pipeline_mode<synchronous>, transform_indices = @transform_3, window_bounds = array<i64: 128, 128>}, {pipeline_mode = #tpu.pipeline_mode<synchronous>, transform_indices = @transform_4, window_bounds = array<i64: 128, 128>}, {pipeline_mode = #tpu.pipeline_mode<synchronous>, transform_indices = @transform_5, window_bounds = array<i64: 128, 128>}, {pipeline_mode = #tpu.pipeline_mode<synchronous>, transform_indices = @transform_6, window_bounds = array<i64: 128, 128>}, {transform_indices = @transform_7, window_bounds = array<i64: 16, 128>}, {transform_indices = @transform_8, window_bounds = array<i64: 1, 4, 128>}]} {
    %c16_i32 = arith.constant 16 : i32
    %0 = arith.muli %arg0, %c16_i32 : i32
    %c0 = arith.constant 0 : index
    %c0_0 = arith.constant 0 : index
    %1 = vector.load %arg1[%c0, %c0_0] : memref<16x1xi32, #tpu.memory_space<vmem>>, vector<16x1xi32>
    %2 = tpu.iota {dimensions = array<i32: 0>} : vector<16x1xi32>
    %3 = vector.broadcast %0 : i32 to vector<16x1xi32>
    %4 = arith.addi %3, %2 : vector<16x1xi32>
    %c14_i32 = arith.constant 14 : i32
    %5 = vector.broadcast %c14_i32 : i32 to vector<16x1xi32>
    %6 = arith.cmpi slt, %4, %5 : vector<16x1xi32>
    %7 = tpu.iota {dimensions = array<i32: 1>} : vector<16x128xi32>
    %8 = vector.broadcast %1 : vector<16x1xi32> to vector<16x128xi32>
    %9 = arith.cmpi eq, %7, %8 : vector<16x128xi32>
    %10 = arith.extui %9 : vector<16x128xi1> to vector<16x128xi32>
    %11 = arith.sitofp %10 : vector<16x128xi32> to vector<16x128xf32>
    %c0_1 = arith.constant 0 : index
    %c0_2 = arith.constant 0 : index
    %12 = vector.load %arg2[%c0_1, %c0_2] : memref<128x128xf32, #tpu.memory_space<vmem>>, vector<128x128xf32>
    %cst = arith.constant dense<0.000000e+00> : vector<16x128xf32>
    %13 = tpu.matmul %11, %12, %cst {dimension_numbers = #tpu.dot_dimension_numbers<[1], [0], [0], [1], [0, 0, 1, 1], [], []>} : vector<16x128xf32>, vector<128x128xf32>, vector<16x128xf32> -> vector<16x128xf32>
    %c0_3 = arith.constant 0 : index
    %c0_4 = arith.constant 0 : index
    %14 = vector.load %arg3[%c0_3, %c0_4] : memref<128x128xf32, #tpu.memory_space<vmem>>, vector<128x128xf32>
    %cst_5 = arith.constant dense<0.000000e+00> : vector<16x128xf32>
    %15 = tpu.matmul %13, %14, %cst_5 {dimension_numbers = #tpu.dot_dimension_numbers<[1], [0], [0], [1], [0, 0, 1, 1], [], []>} : vector<16x128xf32>, vector<128x128xf32>, vector<16x128xf32> -> vector<16x128xf32>
    %16 = tpu.iota {dimensions = array<i32: 1>} : vector<1x128xi32>
    %c16_i32_6 = arith.constant 16 : i32
    %17 = vector.broadcast %c16_i32_6 : i32 to vector<1x128xi32>
    %18 = arith.cmpi slt, %16, %17 : vector<1x128xi32>
    %cst_7 = arith.constant 0xFF800000 : f32
    %19 = vector.shape_cast %18 : vector<1x128xi1> to vector<1x128xi1>
    %20 = vector.broadcast %19 : vector<1x128xi1> to vector<16x128xi1>
    %21 = vector.broadcast %cst_7 : f32 to vector<16x128xf32>
    %22 = arith.select %20, %15, %21 : vector<16x128xi1>, vector<16x128xf32>
    %cst_8 = arith.constant dense<0xFF800000> : vector<16xf32>
    %23 = vector.multi_reduction <maximumf>, %22, %cst_8 [1] : vector<16x128xf32> to vector<16xf32>
    %24 = vector.shape_cast %23 : vector<16xf32> to vector<16x1xf32>
    %25 = vector.broadcast %24 : vector<16x1xf32> to vector<16x128xf32>
    %26 = arith.subf %22, %25 : vector<16x128xf32>
    %27 = math.exp %26 : vector<16x128xf32>
    %cst_9 = arith.constant dense<0.000000e+00> : vector<16xf32>
    %28 = vector.multi_reduction <add>, %27, %cst_9 [1] : vector<16x128xf32> to vector<16xf32>
    %29 = vector.shape_cast %28 : vector<16xf32> to vector<16x1xf32>
    %30 = tpu.reciprocal %29 {approx = true} : vector<16x1xf32> -> vector<16x1xf32>
    %31 = arith.mulf %29, %30 : vector<16x1xf32>
    %cst_10 = arith.constant 2.000000e+00 : f32
    %32 = vector.broadcast %cst_10 : f32 to vector<16x1xf32>
    %33 = arith.subf %32, %31 : vector<16x1xf32>
    %34 = arith.mulf %30, %33 : vector<16x1xf32>
    %35 = vector.broadcast %34 : vector<16x1xf32> to vector<16x128xf32>
    %36 = arith.mulf %27, %35 : vector<16x128xf32>
    %37 = math.log %29 : vector<16x1xf32>
    %38 = vector.broadcast %37 : vector<16x1xf32> to vector<16x128xf32>
    %39 = arith.subf %26, %38 : vector<16x128xf32>
    %c0_11 = arith.constant 0 : index
    %c0_12 = arith.constant 0 : index
    %40 = vector.load %arg4[%c0_11, %c0_12] : memref<128x128xf32, #tpu.memory_space<vmem>>, vector<128x128xf32>
    %cst_13 = arith.constant dense<0.000000e+00> : vector<16x128xf32>
    %41 = tpu.matmul %36, %40, %cst_13 {dimension_numbers = #tpu.dot_dimension_numbers<[1], [0], [0], [1], [0, 0, 1, 1], [], []>} : vector<16x128xf32>, vector<128x128xf32>, vector<16x128xf32> -> vector<16x128xf32>
    %cst_14 = arith.constant 0.000000e+00 : f32
    %42 = vector.shape_cast %18 : vector<1x128xi1> to vector<1x128xi1>
    %43 = vector.broadcast %42 : vector<1x128xi1> to vector<16x128xi1>
    %44 = vector.broadcast %cst_14 : f32 to vector<16x128xf32>
    %45 = arith.select %43, %39, %44 : vector<16x128xi1>, vector<16x128xf32>
    %46 = arith.mulf %36, %45 : vector<16x128xf32>
    %cst_15 = arith.constant 0.000000e+00 : f32
    %47 = vector.shape_cast %6 : vector<16x1xi1> to vector<16x1xi1>
    %48 = vector.broadcast %47 : vector<16x1xi1> to vector<16x128xi1>
    %49 = vector.broadcast %cst_15 : f32 to vector<16x128xf32>
    %50 = arith.select %48, %46, %49 : vector<16x128xi1>, vector<16x128xf32>
    %cst_16 = arith.constant 0.000000e+00 : f32
    %51 = vector.shape_cast %6 : vector<16x1xi1> to vector<16x1xi1>
    %52 = vector.broadcast %51 : vector<16x1xi1> to vector<16x128xi1>
    %53 = vector.broadcast %cst_16 : f32 to vector<16x128xf32>
    %54 = arith.select %52, %36, %53 : vector<16x128xi1>, vector<16x128xf32>
    %cst_17 = arith.constant dense<0.000000e+00> : vector<128xf32>
    %55 = vector.multi_reduction <add>, %50, %cst_17 [0] : vector<16x128xf32> to vector<128xf32>
    %56 = vector.shape_cast %55 : vector<128xf32> to vector<1x128xf32>
    %cst_18 = arith.constant dense<0.000000e+00> : vector<128xf32>
    %57 = vector.multi_reduction <add>, %54, %cst_18 [0] : vector<16x128xf32> to vector<128xf32>
    %58 = vector.shape_cast %57 : vector<128xf32> to vector<1x128xf32>
    %59 = tpu.iota {dimensions = array<i32: 1>} : vector<16x128xi32>
    %60 = vector.broadcast %1 : vector<16x1xi32> to vector<16x128xi32>
    %61 = arith.cmpi eq, %59, %60 : vector<16x128xi32>
    %62 = arith.extui %61 : vector<16x128xi1> to vector<16x128xi32>
    %63 = arith.sitofp %62 : vector<16x128xi32> to vector<16x128xf32>
    %c0_19 = arith.constant 0 : index
    %c0_20 = arith.constant 0 : index
    %64 = vector.load %arg5[%c0_19, %c0_20] : memref<128x128xf32, #tpu.memory_space<vmem>>, vector<128x128xf32>
    %cst_21 = arith.constant dense<0.000000e+00> : vector<16x128xf32>
    %65 = tpu.matmul %63, %64, %cst_21 {dimension_numbers = #tpu.dot_dimension_numbers<[1], [0], [0], [1], [0, 0, 1, 1], [], []>} : vector<16x128xf32>, vector<128x128xf32>, vector<16x128xf32> -> vector<16x128xf32>
    %c0_22 = arith.constant 0 : index
    %c0_23 = arith.constant 0 : index
    %66 = vector.load %arg6[%c0_22, %c0_23] : memref<128x128xf32, #tpu.memory_space<vmem>>, vector<128x128xf32>
    %cst_24 = arith.constant dense<0.000000e+00> : vector<16x128xf32>
    %67 = tpu.matmul %65, %66, %cst_24 {dimension_numbers = #tpu.dot_dimension_numbers<[1], [0], [0], [1], [0, 0, 1, 1], [], []>} : vector<16x128xf32>, vector<128x128xf32>, vector<16x128xf32> -> vector<16x128xf32>
    %68 = tpu.iota {dimensions = array<i32: 1>} : vector<1x128xi32>
    %c24_i32 = arith.constant 24 : i32
    %69 = vector.broadcast %c24_i32 : i32 to vector<1x128xi32>
    %70 = arith.cmpi slt, %68, %69 : vector<1x128xi32>
    %cst_25 = arith.constant 0xFF800000 : f32
    %71 = vector.shape_cast %70 : vector<1x128xi1> to vector<1x128xi1>
    %72 = vector.broadcast %71 : vector<1x128xi1> to vector<16x128xi1>
    %73 = vector.broadcast %cst_25 : f32 to vector<16x128xf32>
    %74 = arith.select %72, %67, %73 : vector<16x128xi1>, vector<16x128xf32>
    %cst_26 = arith.constant dense<0xFF800000> : vector<16xf32>
    %75 = vector.multi_reduction <maximumf>, %74, %cst_26 [1] : vector<16x128xf32> to vector<16xf32>
    %76 = vector.shape_cast %75 : vector<16xf32> to vector<16x1xf32>
    %77 = vector.broadcast %76 : vector<16x1xf32> to vector<16x128xf32>
    %78 = arith.subf %74, %77 : vector<16x128xf32>
    %79 = math.exp %78 : vector<16x128xf32>
    %cst_27 = arith.constant dense<0.000000e+00> : vector<16xf32>
    %80 = vector.multi_reduction <add>, %79, %cst_27 [1] : vector<16x128xf32> to vector<16xf32>
    %81 = vector.shape_cast %80 : vector<16xf32> to vector<16x1xf32>
    %82 = tpu.reciprocal %81 {approx = true} : vector<16x1xf32> -> vector<16x1xf32>
    %83 = arith.mulf %81, %82 : vector<16x1xf32>
    %cst_28 = arith.constant 2.000000e+00 : f32
    %84 = vector.broadcast %cst_28 : f32 to vector<16x1xf32>
    %85 = arith.subf %84, %83 : vector<16x1xf32>
    %86 = arith.mulf %82, %85 : vector<16x1xf32>
    %87 = vector.broadcast %86 : vector<16x1xf32> to vector<16x128xf32>
    %88 = arith.mulf %79, %87 : vector<16x128xf32>
    %89 = math.log %81 : vector<16x1xf32>
    %90 = vector.broadcast %89 : vector<16x1xf32> to vector<16x128xf32>
    %91 = arith.subf %78, %90 : vector<16x128xf32>
    %c0_29 = arith.constant 0 : index
    %c0_30 = arith.constant 0 : index
    %92 = vector.load %arg7[%c0_29, %c0_30] : memref<128x128xf32, #tpu.memory_space<vmem>>, vector<128x128xf32>
    %cst_31 = arith.constant dense<0.000000e+00> : vector<16x128xf32>
    %93 = tpu.matmul %88, %92, %cst_31 {dimension_numbers = #tpu.dot_dimension_numbers<[1], [0], [0], [1], [0, 0, 1, 1], [], []>} : vector<16x128xf32>, vector<128x128xf32>, vector<16x128xf32> -> vector<16x128xf32>
    %cst_32 = arith.constant 0.000000e+00 : f32
    %94 = vector.shape_cast %70 : vector<1x128xi1> to vector<1x128xi1>
    %95 = vector.broadcast %94 : vector<1x128xi1> to vector<16x128xi1>
    %96 = vector.broadcast %cst_32 : f32 to vector<16x128xf32>
    %97 = arith.select %95, %91, %96 : vector<16x128xi1>, vector<16x128xf32>
    %98 = arith.mulf %88, %97 : vector<16x128xf32>
    %cst_33 = arith.constant 0.000000e+00 : f32
    %99 = vector.shape_cast %6 : vector<16x1xi1> to vector<16x1xi1>
    %100 = vector.broadcast %99 : vector<16x1xi1> to vector<16x128xi1>
    %101 = vector.broadcast %cst_33 : f32 to vector<16x128xf32>
    %102 = arith.select %100, %98, %101 : vector<16x128xi1>, vector<16x128xf32>
    %cst_34 = arith.constant 0.000000e+00 : f32
    %103 = vector.shape_cast %6 : vector<16x1xi1> to vector<16x1xi1>
    %104 = vector.broadcast %103 : vector<16x1xi1> to vector<16x128xi1>
    %105 = vector.broadcast %cst_34 : f32 to vector<16x128xf32>
    %106 = arith.select %104, %88, %105 : vector<16x128xi1>, vector<16x128xf32>
    %cst_35 = arith.constant dense<0.000000e+00> : vector<128xf32>
    %107 = vector.multi_reduction <add>, %102, %cst_35 [0] : vector<16x128xf32> to vector<128xf32>
    %108 = vector.shape_cast %107 : vector<128xf32> to vector<1x128xf32>
    %cst_36 = arith.constant dense<0.000000e+00> : vector<128xf32>
    %109 = vector.multi_reduction <add>, %106, %cst_36 [0] : vector<16x128xf32> to vector<128xf32>
    %110 = vector.shape_cast %109 : vector<128xf32> to vector<1x128xf32>
    %111 = arith.addf %41, %93 : vector<16x128xf32>
    %c0_37 = arith.constant 0 : index
    %c0_38 = arith.constant 0 : index
    %112 = vector.load %arg8[%c0_37, %c0_38] : memref<16x128xf32, #tpu.memory_space<vmem>>, vector<16x128xf32>
    tpu.vector_store %arg8[%c0_37, %c0_38], %111 {strides = array<i32>} : memref<16x128xf32, #tpu.memory_space<vmem>>, vector<16x128xf32>,
    %113 = tpu.concatenate %56, %58, %108, %110 in 0 : vector<1x128xf32>, vector<1x128xf32>, vector<1x128xf32>, vector<1x128xf32> -> vector<4x128xf32>
    %c0_39 = arith.constant 0 : index
    %c0_40 = arith.constant 0 : index
    %c0_41 = arith.constant 0 : index
    %114 = vector.load %arg9[%c0_39, %c0_40, %c0_41] : memref<1x4x128xf32, #tpu.memory_space<vmem>>, vector<1x4x128xf32>
    %115 = vector.shape_cast %114 : vector<1x4x128xf32> to vector<4x128xf32>
    %116 = vector.shape_cast %113 : vector<4x128xf32> to vector<1x4x128xf32>
    tpu.vector_store %arg9[%c0_39, %c0_40, %c0_41], %116 {strides = array<i32>} : memref<1x4x128xf32, #tpu.memory_space<vmem>>, vector<1x4x128xf32>,
    return
  }
  func.func @transform_0(%arg0: i32) -> (i32, i32) {
    %c0_i32 = arith.constant 0 : i32
    %c0_i32_0 = arith.constant 0 : i32
    return %arg0, %c0_i32 : i32, i32
  }
  func.func @transform_1(%arg0: i32) -> (i32, i32) {
    %c0_i32 = arith.constant 0 : i32
    %c0_i32_0 = arith.constant 0 : i32
    %c0_i32_1 = arith.constant 0 : i32
    return %c0_i32, %c0_i32_0 : i32, i32
  }
  func.func @transform_2(%arg0: i32) -> (i32, i32) {
    %c0_i32 = arith.constant 0 : i32
    %c0_i32_0 = arith.constant 0 : i32
    %c0_i32_1 = arith.constant 0 : i32
    return %c0_i32, %c0_i32_0 : i32, i32
  }
  func.func @transform_3(%arg0: i32) -> (i32, i32) {
    %c0_i32 = arith.constant 0 : i32
    %c0_i32_0 = arith.constant 0 : i32
    %c0_i32_1 = arith.constant 0 : i32
    return %c0_i32, %c0_i32_0 : i32, i32
  }
  func.func @transform_4(%arg0: i32) -> (i32, i32) {
    %c0_i32 = arith.constant 0 : i32
    %c0_i32_0 = arith.constant 0 : i32
    %c0_i32_1 = arith.constant 0 : i32
    return %c0_i32, %c0_i32_0 : i32, i32
  }
  func.func @transform_5(%arg0: i32) -> (i32, i32) {
    %c0_i32 = arith.constant 0 : i32
    %c0_i32_0 = arith.constant 0 : i32
    %c0_i32_1 = arith.constant 0 : i32
    return %c0_i32, %c0_i32_0 : i32, i32
  }
  func.func @transform_6(%arg0: i32) -> (i32, i32) {
    %c0_i32 = arith.constant 0 : i32
    %c0_i32_0 = arith.constant 0 : i32
    %c0_i32_1 = arith.constant 0 : i32
    return %c0_i32, %c0_i32_0 : i32, i32
  }
  func.func @transform_7(%arg0: i32) -> (i32, i32) {
    %c0_i32 = arith.constant 0 : i32
    %c0_i32_0 = arith.constant 0 : i32
    return %arg0, %c0_i32 : i32, i32
  }
  func.func @transform_8(%arg0: i32) -> (i32, i32, i32) {
    %c0_i32 = arith.constant 0 : i32
    %c0_i32_0 = arith.constant 0 : i32
    %c0_i32_1 = arith.constant 0 : i32
    return %arg0, %c0_i32, %c0_i32_0 : i32, i32, i32
  }
}

</mosaic_0001>

<llo_original>
// kernel: tpu_custom_call.1
$region0: #{tpu_custom_call.1}
  #allocation0 [shape = 'u32[]', space=smem, size = 0x4, offset = 0x4, fixed_abs, tag = 'smem constant byte address 0x4 - core index']
  #allocation1 [shape = 'u32[144,128]{1,0:T(1,128)}', space=vmem, size = 0x12000, scoped, tag = 'internal scratch']
  %s0 = inlined_call_operand.vmem [shape: s32[16,1], index: 0, kind: input, shape index: {}]
  %s1 = inlined_call_operand.hbm [shape: f32[128,128], index: 1, kind: input, shape index: {}]
  %s2 = inlined_call_operand.hbm [shape: f32[128,128], index: 2, kind: input, shape index: {}]
  %s3 = inlined_call_operand.hbm [shape: f32[128,128], index: 3, kind: input, shape index: {}]
  %s4 = inlined_call_operand.hbm [shape: f32[128,128], index: 4, kind: input, shape index: {}]
  %s5 = inlined_call_operand.hbm [shape: f32[128,128], index: 5, kind: input, shape index: {}]
  %s6 = inlined_call_operand.hbm [shape: f32[128,128], index: 6, kind: input, shape index: {}]
  %s7 = inlined_call_operand.hbm [shape: f32[16,128], index: 7, kind: output, shape index: {0}]
  %s8 = inlined_call_operand.hbm [shape: f32[1,4,128], index: 8, kind: output, shape index: {1}]
  %9 = xla_tuple %s7, %s8
  %s10 = sld [smem:[#allocation0]]
  $region70: #{tpu_custom_call.1} parent=0
    _
  %s12 = ssub.s32 1, %s10
  %s13 = scalar_select 0, %s12, %s10
  $region1: #{tpu_custom_call.1} parent=0
    #allocation2 [shape = 'u8[65536]{0}', space=vmem, size = 0x10000, scoped, tag = 'input window, operand 1, single buffered']
    #allocation3 [shape = 's32[1]{0}', space=sflag, size = 0x4, scoped, tag = 'scoped memory for tpu_custom_call.1']
    #allocation4 [shape = 's32[1]{0}', space=sflag, size = 0x4, scoped, tag = 'scoped memory for tpu_custom_call.1']
    #allocation5 [shape = 'u8[65536]{0}', space=vmem, size = 0x10000, scoped, tag = 'input window, operand 2, single buffered']
    #allocation6 [shape = 's32[1]{0}', space=sflag, size = 0x4, scoped, tag = 'scoped memory for tpu_custom_call.1']
    #allocation7 [shape = 'u8[65536]{0}', space=vmem, size = 0x10000, scoped, tag = 'input window, operand 3, single buffered']
    #allocation8 [shape = 'u8[65536]{0}', space=vmem, size = 0x10000, scoped, tag = 'input window, operand 4, single buffered']
    #allocation9 [shape = 's32[1]{0}', space=sflag, size = 0x4, scoped, tag = 'scoped memory for tpu_custom_call.1']
    #allocation10 [shape = 'u8[65536]{0}', space=vmem, size = 0x10000, scoped, tag = 'input window, operand 5, single buffered']
    #allocation11 [shape = 'u8[65536]{0}', space=vmem, size = 0x10000, scoped, tag = 'input window, operand 6, single buffered']
    #allocation12 [shape = 's32[1]{0}', space=sflag, size = 0x4, scoped, tag = 'scoped memory for tpu_custom_call.1']
    #allocation13 [shape = 'u8[8192]{0}', space=vmem, size = 0x2000, scoped, tag = 'output window, operand 0, single buffered']
    #allocation14 [shape = 'u8[2048]{0}', space=vmem, size = 0x800, scoped, tag = 'output window, operand 1, single buffered']
    #allocation15 [shape = 's32[1]{0}', space=sflag, size = 0x4, scoped, tag = 'scoped memory for tpu_custom_call.1']
    %14 = vsyncpa [#allocation3], 0
    %15 = vsyncpa [#allocation6], 0
    %16 = vsyncpa [#allocation9], 0
    %17 = vsyncpa [#allocation12], 0
    %18 = vsyncpa [#allocation4], 0
    %19 = vsyncpa [#allocation15], 0
    // Predicated region
    $region2: #{tpu_custom_call.1} parent=1 // pred_check
      _
    $region3: #{tpu_custom_call.1} parent=1 // pred_check_branch
      %21 = sbr.rel (0) target = $region5
    $region4: #{tpu_custom_call.1} parent=1 // pred_region
      _
    $region5: #{tpu_custom_call.1} parent=1 // pred_fallthru
      _
    // Predicated region
    $region6: #{tpu_custom_call.1} parent=1 // pred_check
      _
    $region7: #{tpu_custom_call.1} parent=1 // pred_check_branch
      %23 = sbr.rel (0) target = $region9
    $region8: #{tpu_custom_call.1} parent=1 // pred_region
      %s25 = ssub.s32 2048, 2048
      %26 = vsyncadd [#allocation3], %s25
      %s27 = sshll.u32 [#allocation2], 4
      %s28 = int_to_ptr.vmem [resolvable:$true] %s27
      %33 = dma.hbm_to_vmem [thread:$0]  %s1, 2048, %s28, [#allocation3], 128, 128, 8
    $region9: #{tpu_custom_call.1} parent=1 // pred_fallthru
      _
    // Predicated region
    $region10: #{tpu_custom_call.1} parent=1 // pred_check
      _
    $region11: #{tpu_custom_call.1} parent=1 // pred_check_branch
      %35 = sbr.rel (0) target = $region13
    $region12: #{tpu_custom_call.1} parent=1 // pred_region
      %s37 = ssub.s32 2048, 2048
      %38 = vsyncadd [#allocation6], %s37
      %s39 = sshll.u32 [#allocation5], 4
      %s40 = int_to_ptr.vmem [resolvable:$true] %s39
      %45 = dma.hbm_to_vmem [thread:$0]  %s2, 2048, %s40, [#allocation6], 128, 128, 8
    $region13: #{tpu_custom_call.1} parent=1 // pred_fallthru
      _
    // Predicated region
    $region14: #{tpu_custom_call.1} parent=1 // pred_check
      _
    $region15: #{tpu_custom_call.1} parent=1 // pred_check_branch
      %47 = sbr.rel (0) target = $region17
    $region16: #{tpu_custom_call.1} parent=1 // pred_region
      %s49 = ssub.s32 2048, 2048
      %50 = vsyncadd [#allocation6], %s49
      %s51 = sshll.u32 [#allocation7], 4
      %s52 = int_to_ptr.vmem [resolvable:$true] %s51
      %57 = dma.hbm_to_vmem [thread:$0]  %s3, 2048, %s52, [#allocation6], 128, 128, 8
    $region17: #{tpu_custom_call.1} parent=1 // pred_fallthru
      _
    // Predicated region
    $region18: #{tpu_custom_call.1} parent=1 // pred_check
      _
    $region19: #{tpu_custom_call.1} parent=1 // pred_check_branch
      %59 = sbr.rel (0) target = $region21
    $region20: #{tpu_custom_call.1} parent=1 // pred_region
      %s61 = ssub.s32 2048, 2048
      %62 = vsyncadd [#allocation9], %s61
      %s63 = sshll.u32 [#allocation8], 4
      %s64 = int_to_ptr.vmem [resolvable:$true] %s63
      %69 = dma.hbm_to_vmem [thread:$0]  %s4, 2048, %s64, [#allocation9], 128, 128, 8
    $region21: #{tpu_custom_call.1} parent=1 // pred_fallthru
      _
    // Predicated region
    $region22: #{tpu_custom_call.1} parent=1 // pred_check
      _
    $region23: #{tpu_custom_call.1} parent=1 // pred_check_branch
      %71 = sbr.rel (0) target = $region25
    $region24: #{tpu_custom_call.1} parent=1 // pred_region
      %s73 = ssub.s32 2048, 2048
      %74 = vsyncadd [#allocation9], %s73
      %s75 = sshll.u32 [#allocation10], 4
      %s76 = int_to_ptr.vmem [resolvable:$true] %s75
      %81 = dma.hbm_to_vmem [thread:$0]  %s5, 2048, %s76, [#allocation9], 128, 128, 8
    $region25: #{tpu_custom_call.1} parent=1 // pred_fallthru
      _
    // Predicated region
    $region26: #{tpu_custom_call.1} parent=1 // pred_check
      _
    $region27: #{tpu_custom_call.1} parent=1 // pred_check_branch
      %83 = sbr.rel (0) target = $region29
    $region28: #{tpu_custom_call.1} parent=1 // pred_region
      %s85 = ssub.s32 2048, 2048
      %86 = vsyncadd [#allocation12], %s85
      %s87 = sshll.u32 [#allocation11], 4
      %s88 = int_to_ptr.vmem [resolvable:$true] %s87
      %93 = dma.hbm_to_vmem [thread:$0]  %s6, 2048, %s88, [#allocation12], 128, 128, 8
    $region29: #{tpu_custom_call.1} parent=1 // pred_fallthru
      _
    // Predicated region
    $region30: #{tpu_custom_call.1} parent=1 // pred_check
      _
    $region31: #{tpu_custom_call.1} parent=1 // pred_check_branch
      %95 = sbr.rel (0) target = $region33
    $region32: #{tpu_custom_call.1} parent=1 // pred_region
      %96 = dma.done [#allocation3], 2048
    $region33: #{tpu_custom_call.1} parent=1 // pred_fallthru
      _
    // Predicated region
    $region34: #{tpu_custom_call.1} parent=1 // pred_check
      _
    $region35: #{tpu_custom_call.1} parent=1 // pred_check_branch
      %98 = sbr.rel (0) target = $region37
    $region36: #{tpu_custom_call.1} parent=1 // pred_region
      %99 = dma.done [#allocation6], 2048
    $region37: #{tpu_custom_call.1} parent=1 // pred_fallthru
      _
    // Predicated region
    $region38: #{tpu_custom_call.1} parent=1 // pred_check
      _
    $region39: #{tpu_custom_call.1} parent=1 // pred_check_branch
      %101 = sbr.rel (0) target = $region41
    $region40: #{tpu_custom_call.1} parent=1 // pred_region
      %102 = dma.done [#allocation6], 2048
    $region41: #{tpu_custom_call.1} parent=1 // pred_fallthru
      _
    // Predicated region
    $region42: #{tpu_custom_call.1} parent=1 // pred_check
      _
    $region43: #{tpu_custom_call.1} parent=1 // pred_check_branch
      %104 = sbr.rel (0) target = $region45
    $region44: #{tpu_custom_call.1} parent=1 // pred_region
      %105 = dma.done [#allocation9], 2048
    $region45: #{tpu_custom_call.1} parent=1 // pred_fallthru
      _
    // Predicated region
    $region46: #{tpu_custom_call.1} parent=1 // pred_check
      _
    $region47: #{tpu_custom_call.1} parent=1 // pred_check_branch
      %107 = sbr.rel (0) target = $region49
    $region48: #{tpu_custom_call.1} parent=1 // pred_region
      %108 = dma.done [#allocation9], 2048
    $region49: #{tpu_custom_call.1} parent=1 // pred_fallthru
      _
    // Predicated region
    $region50: #{tpu_custom_call.1} parent=1 // pred_check
      _
    $region51: #{tpu_custom_call.1} parent=1 // pred_check_branch
      %110 = sbr.rel (0) target = $region53
    $region52: #{tpu_custom_call.1} parent=1 // pred_region
      %111 = dma.done [#allocation12], 2048
    $region53: #{tpu_custom_call.1} parent=1 // pred_fallthru
      _
    %s112 = smul.u32 0, 16
    %v113 = vld [vmem:[%s0] sm:$0xff]
    %v114 = vld [vmem:[%s0 + $0x8] sm:$0xff]
    %v115 = vlaneseq
    %v116 = vshrl.u32 %v115, 7
    %v117 = vadd.s32 %v116, 8
    %v118 = vstv %s112
    %v119 = vadd.s32 %v118, %v116
    %v120 = vadd.s32 %v118, %v117
    %vm121 = vcmp.lt.s32.totalorder %v119, 14
    %vm122 = vcmp.lt.s32.totalorder %v120, 14
    %v123 = vlaneseq
    %v124 = vand.u32 %v123, 127
    %125 = vset.pattern.permute.xlu0 0
    %126 = vperm.xlu0 %125, %v113
    %v127 = vpop.permute.xlu0 %126
    %128 = vset.pattern.permute.xlu0 0
    %129 = vperm.xlu0 %128, %v114
    %v130 = vpop.permute.xlu0 %129
    %vm131 = vcmp.eq.s32.totalorder %v124, %v127
    %vm132 = vcmp.eq.s32.totalorder %v124, %v130
    %v133 = vsel %vm131, 1, 0
    %v134 = vsel %vm132, 1, 0
    %v135 = vcvt.s32.f32 %v133
    %v136 = vcvt.s32.f32 %v134
    %v137 = vld [vmem:[#allocation2] sm:$0xff]
    %v138 = vld [vmem:[#allocation2 + $0x8] sm:$0xff]
    %v139 = vld [vmem:[#allocation2 + $0x10] sm:$0xff]
    %v140 = vld [vmem:[#allocation2 + $0x18] sm:$0xff]
    %v141 = vld [vmem:[#allocation2 + $0x20] sm:$0xff]
    %v142 = vld [vmem:[#allocation2 + $0x28] sm:$0xff]
    %v143 = vld [vmem:[#allocation2 + $0x30] sm:$0xff]
    %v144 = vld [vmem:[#allocation2 + $0x38] sm:$0xff]
    %v145 = vld [vmem:[#allocation2 + $0x40] sm:$0xff]
    %v146 = vld [vmem:[#allocation2 + $0x48] sm:$0xff]
    %v147 = vld [vmem:[#allocation2 + $0x50] sm:$0xff]
    %v148 = vld [vmem:[#allocation2 + $0x58] sm:$0xff]
    %v149 = vld [vmem:[#allocation2 + $0x60] sm:$0xff]
    %v150 = vld [vmem:[#allocation2 + $0x68] sm:$0xff]
    %v151 = vld [vmem:[#allocation2 + $0x70] sm:$0xff]
    %v152 = vld [vmem:[#allocation2 + $0x78] sm:$0xff]
    %153 = vmatprep.subr.mxu0 0.0
    %154 = vmatpush1.msra.mxu0 %v137
    %155 = vmatprep.subr.mxu0 0.0
    %156 = vmatpush1.msra.mxu0 %v138
    %157 = vmatprep.subr.mxu0 0.0
    %158 = vmatpush1.msra.mxu0 %v139
    %159 = vmatprep.subr.mxu0 0.0
    %160 = vmatpush1.msra.mxu0 %v140
    %161 = vmatprep.subr.mxu0 0.0
    %162 = vmatpush1.msra.mxu0 %v141
    %163 = vmatprep.subr.mxu0 0.0
    %164 = vmatpush1.msra.mxu0 %v142
    %165 = vmatprep.subr.mxu0 0.0
    %166 = vmatpush1.msra.mxu0 %v143
    %167 = vmatprep.subr.mxu0 0.0
    %168 = vmatpush1.msra.mxu0 %v144
    %169 = vmatprep.subr.mxu0 0.0
    %170 = vmatpush1.msra.mxu0 %v145
    %171 = vmatprep.subr.mxu0 0.0
    %172 = vmatpush1.msra.mxu0 %v146
    %173 = vmatprep.subr.mxu0 0.0
    %174 = vmatpush1.msra.mxu0 %v147
    %175 = vmatprep.subr.mxu0 0.0
    %176 = vmatpush1.msra.mxu0 %v148
    %177 = vmatprep.subr.mxu0 0.0
    %178 = vmatpush1.msra.mxu0 %v149
    %179 = vmatprep.subr.mxu0 0.0
    %180 = vmatpush1.msra.mxu0 %v150
    %181 = vmatprep.subr.mxu0 0.0
    %182 = vmatpush1.msra.mxu0 %v151
    %183 = vmatprep.subr.mxu0 0.0
    %184 = vmatpush1.msra.mxu0 %v152
    %185 = vmatprep.subr.mxu0 0.0
    %186 = vmatpush1.msra.mxu0 0.0
    %187 = vmatprep.subr.mxu0 0.0
    %188 = vmatpush1.msra.mxu0 0.0
    %189 = vmatprep.subr.mxu0 0.0
    %190 = vmatpush1.msra.mxu0 0.0
    %191 = vmatprep.subr.mxu0 0.0
    %192 = vmatpush1.msra.mxu0 0.0
    %193 = vmatprep.subr.mxu0 0.0
    %194 = vmatpush1.msra.mxu0 0.0
    %195 = vmatprep.subr.mxu0 0.0
    %196 = vmatpush1.msra.mxu0 0.0
    %197 = vmatprep.subr.mxu0 0.0
    %198 = vmatpush1.msra.mxu0 0.0
    %199 = vmatprep.subr.mxu0 0.0
    %200 = vmatpush1.msra.mxu0 0.0
    %201 = vmatprep.subr.mxu0 0.0
    %202 = vmatpush1.msra.mxu0 0.0
    %203 = vmatprep.subr.mxu0 0.0
    %204 = vmatpush1.msra.mxu0 0.0
    %205 = vmatprep.subr.mxu0 0.0
    %206 = vmatpush1.msra.mxu0 0.0
    %207 = vmatprep.subr.mxu0 0.0
    %208 = vmatpush1.msra.mxu0 0.0
    %209 = vmatprep.subr.mxu0 0.0
    %210 = vmatpush1.msra.mxu0 0.0
    %211 = vmatprep.subr.mxu0 0.0
    %212 = vmatpush1.msra.mxu0 0.0
    %213 = vmatprep.subr.mxu0 0.0
    %214 = vmatpush1.msra.mxu0 0.0
    %215 = vmatprep.subr.mxu0 0.0
    %216 = vmatpush1.msra.mxu0 0.0
    %217 = vmatprep.mubr.f32.mxu0 0.0
    %218 = vmatmul.mubr.f32.gmra.mrb[0].mxu0 %v135
    %v219 = vpop.f32.mrb[0].mxu0
    %v220 = vadd.f32 0.0, %v219
    %v221 = vpop.f32.mrb[0].mxu0
    %222 = vmatprep.mubr.f32.mxu0 0.0
    %223 = vmatmul.mubr.f32.gmra.mrb[0].mxu0 %v136
    %v224 = vpop.f32.mrb[0].mxu0
    %v225 = vadd.f32 0.0, %v224
    %v226 = vpop.f32.mrb[0].mxu0
    %227 = vdwg.mxu0
    %v228 = vld [vmem:[#allocation5] sm:$0xff]
    %v229 = vld [vmem:[#allocation5 + $0x8] sm:$0xff]
    %v230 = vld [vmem:[#allocation5 + $0x10] sm:$0xff]
    %v231 = vld [vmem:[#allocation5 + $0x18] sm:$0xff]
    %v232 = vld [vmem:[#allocation5 + $0x20] sm:$0xff]
    %v233 = vld [vmem:[#allocation5 + $0x28] sm:$0xff]
    %v234 = vld [vmem:[#allocation5 + $0x30] sm:$0xff]
    %v235 = vld [vmem:[#allocation5 + $0x38] sm:$0xff]
    %v236 = vld [vmem:[#allocation5 + $0x40] sm:$0xff]
    %v237 = vld [vmem:[#allocation5 + $0x48] sm:$0xff]
    %v238 = vld [vmem:[#allocation5 + $0x50] sm:$0xff]
    %v239 = vld [vmem:[#allocation5 + $0x58] sm:$0xff]
    %v240 = vld [vmem:[#allocation5 + $0x60] sm:$0xff]
    %v241 = vld [vmem:[#allocation5 + $0x68] sm:$0xff]
    %v242 = vld [vmem:[#allocation5 + $0x70] sm:$0xff]
    %v243 = vld [vmem:[#allocation5 + $0x78] sm:$0xff]
    %244 = vmatprep.subr.mxu0 0.0
    %245 = vmatpush1.msra.mxu0 %v228
    %246 = vmatprep.subr.mxu0 0.0
    %247 = vmatpush1.msra.mxu0 %v229
    %248 = vmatprep.subr.mxu0 0.0
    %249 = vmatpush1.msra.mxu0 %v230
    %250 = vmatprep.subr.mxu0 0.0
    %251 = vmatpush1.msra.mxu0 %v231
    %252 = vmatprep.subr.mxu0 0.0
    %253 = vmatpush1.msra.mxu0 %v232
    %254 = vmatprep.subr.mxu0 0.0
    %255 = vmatpush1.msra.mxu0 %v233
    %256 = vmatprep.subr.mxu0 0.0
    %257 = vmatpush1.msra.mxu0 %v234
    %258 = vmatprep.subr.mxu0 0.0
    %259 = vmatpush1.msra.mxu0 %v235
    %260 = vmatprep.subr.mxu0 0.0
    %261 = vmatpush1.msra.mxu0 %v236
    %262 = vmatprep.subr.mxu0 0.0
    %263 = vmatpush1.msra.mxu0 %v237
    %264 = vmatprep.subr.mxu0 0.0
    %265 = vmatpush1.msra.mxu0 %v238
    %266 = vmatprep.subr.mxu0 0.0
    %267 = vmatpush1.msra.mxu0 %v239
    %268 = vmatprep.subr.mxu0 0.0
    %269 = vmatpush1.msra.mxu0 %v240
    %270 = vmatprep.subr.mxu0 0.0
    %271 = vmatpush1.msra.mxu0 %v241
    %272 = vmatprep.subr.mxu0 0.0
    %273 = vmatpush1.msra.mxu0 %v242
    %274 = vmatprep.subr.mxu0 0.0
    %275 = vmatpush1.msra.mxu0 %v243
    %276 = vmatprep.subr.mxu0 0.0
    %277 = vmatpush1.msra.mxu0 0.0
    %278 = vmatprep.subr.mxu0 0.0
    %279 = vmatpush1.msra.mxu0 0.0
    %280 = vmatprep.subr.mxu0 0.0
    %281 = vmatpush1.msra.mxu0 0.0
    %282 = vmatprep.subr.mxu0 0.0
    %283 = vmatpush1.msra.mxu0 0.0
    %284 = vmatprep.subr.mxu0 0.0
    %285 = vmatpush1.msra.mxu0 0.0
    %286 = vmatprep.subr.mxu0 0.0
    %287 = vmatpush1.msra.mxu0 0.0
    %288 = vmatprep.subr.mxu0 0.0
    %289 = vmatpush1.msra.mxu0 0.0
    %290 = vmatprep.subr.mxu0 0.0
    %291 = vmatpush1.msra.mxu0 0.0
    %292 = vmatprep.subr.mxu0 0.0
    %293 = vmatpush1.msra.mxu0 0.0
    %294 = vmatprep.subr.mxu0 0.0
    %295 = vmatpush1.msra.mxu0 0.0
    %296 = vmatprep.subr.mxu0 0.0
    %297 = vmatpush1.msra.mxu0 0.0
    %298 = vmatprep.subr.mxu0 0.0
    %299 = vmatpush1.msra.mxu0 0.0
    %300 = vmatprep.subr.mxu0 0.0
    %301 = vmatpush1.msra.mxu0 0.0
    %302 = vmatprep.subr.mxu0 0.0
    %303 = vmatpush1.msra.mxu0 0.0
    %304 = vmatprep.subr.mxu0 0.0
    %305 = vmatpush1.msra.mxu0 0.0
    %306 = vmatprep.subr.mxu0 0.0
    %307 = vmatpush1.msra.mxu0 0.0
    %308 = vmatprep.mubr.f32.mxu0 0.0
    %309 = vmatmul.mubr.f32.gmra.mrb[0].mxu0 %v220
    %v310 = vpop.f32.mrb[0].mxu0
    %v311 = vadd.f32 0.0, %v310
    %v312 = vpop.f32.mrb[0].mxu0
    %313 = vmatprep.mubr.f32.mxu0 0.0
    %314 = vmatmul.mubr.f32.gmra.mrb[0].mxu0 %v225
    %v315 = vpop.f32.mrb[0].mxu0
    %v316 = vadd.f32 0.0, %v315
    %v317 = vpop.f32.mrb[0].mxu0
    %318 = vdwg.mxu0
    %vm319 = vcmp.lt.s32.totalorder %v124, 16
    %v320 = vsel %vm319, 1, 0
    %vm321 = vcmp.eq.s32.totalorder %v320, 1
    %v322 = vsel %vm321, %v311, -inf
    %v323 = vsel %vm321, %v316, -inf
    %324 = vmax.xlane.f32.xlu0 %v322
    %v325 = vpop.xlane.xlu0 %324
    %326 = vmax.xlane.f32.xlu0 %v323
    %v327 = vpop.xlane.xlu0 %326
    %v328 = vsub.f32 %v322, %v325
    %v329 = vsub.f32 %v323, %v327
    %v330 = vmul.f32 %v328, 1.442695
    %v331 = vpow.pop %v330
    %v332 = vmul.f32 %v329, 1.442695
    %v333 = vpow.pop %v332
    %334 = vadd.xlane.f32.xlu0 %v331
    %v335 = vpop.xlane.xlu0 %334
    %336 = vadd.xlane.f32.xlu0 %v333
    %v337 = vpop.xlane.xlu0 %336
    %v338 = vrcp.pop %v335
    %v339 = vrcp.pop %v337
    %v340 = vmul.f32 %v335, %v338
    %v341 = vmul.f32 %v337, %v339
    %v342 = vsub.f32 2.0, %v340
    %v343 = vsub.f32 2.0, %v341
    %v344 = vmul.f32 %v338, %v342
    %v345 = vmul.f32 %v339, %v343
    %v346 = vmul.f32 %v331, %v344
    %v347 = vmul.f32 %v333, %v345
    %v348 = vlog2.pop %v335
    %v349 = vmul.f32 %v348, 0.6931472
    %v350 = vlog2.pop %v337
    %v351 = vmul.f32 %v350, 0.6931472
    %v352 = vsub.f32 %v328, %v349
    %v353 = vsub.f32 %v329, %v351
    %v354 = vld [vmem:[#allocation7] sm:$0xff]
    %v355 = vld [vmem:[#allocation7 + $0x8] sm:$0xff]
    %v356 = vld [vmem:[#allocation7 + $0x10] sm:$0xff]
    %v357 = vld [vmem:[#allocation7 + $0x18] sm:$0xff]
    %v358 = vld [vmem:[#allocation7 + $0x20] sm:$0xff]
    %v359 = vld [vmem:[#allocation7 + $0x28] sm:$0xff]
    %v360 = vld [vmem:[#allocation7 + $0x30] sm:$0xff]
    %v361 = vld [vmem:[#allocation7 + $0x38] sm:$0xff]
    %v362 = vld [vmem:[#allocation7 + $0x40] sm:$0xff]
    %v363 = vld [vmem:[#allocation7 + $0x48] sm:$0xff]
    %v364 = vld [vmem:[#allocation7 + $0x50] sm:$0xff]
    %v365 = vld [vmem:[#allocation7 + $0x58] sm:$0xff]
    %v366 = vld [vmem:[#allocation7 + $0x60] sm:$0xff]
    %v367 = vld [vmem:[#allocation7 + $0x68] sm:$0xff]
    %v368 = vld [vmem:[#allocation7 + $0x70] sm:$0xff]
    %v369 = vld [vmem:[#allocation7 + $0x78] sm:$0xff]
    %v370 = vsel %vm321, %v352, 0.0
    %v371 = vsel %vm321, %v353, 0.0
    %v372 = vmul.f32 %v346, %v370
    %v373 = vmul.f32 %v347, %v371
    %v374 = vsel %vm121, 1, 0
    %v375 = vsel %vm122, 1, 0
    %vm376 = vcmp.eq.s32.totalorder %v374, 1
    %vm377 = vcmp.eq.s32.totalorder %v375, 1
    %v378 = vsel %vm376, %v372, 0.0
    %v379 = vsel %vm377, %v373, 0.0
    %v380 = vsel %vm376, %v346, 0.0
    %v381 = vsel %vm377, %v347, 0.0
    %v382 = vadd.f32 %v378, %v379
    %v383 = vrot.slane %v382, 4
    %v384 = vadd.f32 %v382, %v383
    %v385 = vrot.slane %v384, 2
    %v386 = vadd.f32 %v384, %v385
    %v387 = vrot.slane %v386, 1
    %v388 = vadd.f32 %v386, %v387
    %v389 = vadd.f32 %v380, %v381
    %v390 = vrot.slane %v389, 4
    %v391 = vadd.f32 %v389, %v390
    %v392 = vrot.slane %v391, 2
    %v393 = vadd.f32 %v391, %v392
    %v394 = vrot.slane %v393, 1
    %v395 = vadd.f32 %v393, %v394
    %v396 = vld [vmem:[#allocation8] sm:$0xff]
    %v397 = vld [vmem:[#allocation8 + $0x8] sm:$0xff]
    %v398 = vld [vmem:[#allocation8 + $0x10] sm:$0xff]
    %v399 = vld [vmem:[#allocation8 + $0x18] sm:$0xff]
    %v400 = vld [vmem:[#allocation8 + $0x20] sm:$0xff]
    %v401 = vld [vmem:[#allocation8 + $0x28] sm:$0xff]
    %v402 = vld [vmem:[#allocation8 + $0x30] sm:$0xff]
    %v403 = vld [vmem:[#allocation8 + $0x38] sm:$0xff]
    %v404 = vld [vmem:[#allocation8 + $0x40] sm:$0xff]
    %v405 = vld [vmem:[#allocation8 + $0x48] sm:$0xff]
    %v406 = vld [vmem:[#allocation8 + $0x50] sm:$0xff]
    %v407 = vld [vmem:[#allocation8 + $0x58] sm:$0xff]
    %v408 = vld [vmem:[#allocation8 + $0x60] sm:$0xff]
    %v409 = vld [vmem:[#allocation8 + $0x68] sm:$0xff]
    %v410 = vld [vmem:[#allocation8 + $0x70] sm:$0xff]
    %v411 = vld [vmem:[#allocation8 + $0x78] sm:$0xff]
    %412 = vmatprep.subr.mxu0 0.0
    %413 = vmatpush1.msra.mxu0 %v396
    %414 = vmatprep.subr.mxu0 0.0
    %415 = vmatpush1.msra.mxu0 %v397
    %416 = vmatprep.subr.mxu0 0.0
    %417 = vmatpush1.msra.mxu0 %v398
    %418 = vmatprep.subr.mxu0 0.0
    %419 = vmatpush1.msra.mxu0 %v399
    %420 = vmatprep.subr.mxu0 0.0
    %421 = vmatpush1.msra.mxu0 %v400
    %422 = vmatprep.subr.mxu0 0.0
    %423 = vmatpush1.msra.mxu0 %v401
    %424 = vmatprep.subr.mxu0 0.0
    %425 = vmatpush1.msra.mxu0 %v402
    %426 = vmatprep.subr.mxu0 0.0
    %427 = vmatpush1.msra.mxu0 %v403
    %428 = vmatprep.subr.mxu0 0.0
    %429 = vmatpush1.msra.mxu0 %v404
    %430 = vmatprep.subr.mxu0 0.0
    %431 = vmatpush1.msra.mxu0 %v405
    %432 = vmatprep.subr.mxu0 0.0
    %433 = vmatpush1.msra.mxu0 %v406
    %434 = vmatprep.subr.mxu0 0.0
    %435 = vmatpush1.msra.mxu0 %v407
    %436 = vmatprep.subr.mxu0 0.0
    %437 = vmatpush1.msra.mxu0 %v408
    %438 = vmatprep.subr.mxu0 0.0
    %439 = vmatpush1.msra.mxu0 %v409
    %440 = vmatprep.subr.mxu0 0.0
    %441 = vmatpush1.msra.mxu0 %v410
    %442 = vmatprep.subr.mxu0 0.0
    %443 = vmatpush1.msra.mxu0 %v411
    %444 = vmatprep.subr.mxu0 0.0
    %445 = vmatpush1.msra.mxu0 0.0
    %446 = vmatprep.subr.mxu0 0.0
    %447 = vmatpush1.msra.mxu0 0.0
    %448 = vmatprep.subr.mxu0 0.0
    %449 = vmatpush1.msra.mxu0 0.0
    %450 = vmatprep.subr.mxu0 0.0
    %451 = vmatpush1.msra.mxu0 0.0
    %452 = vmatprep.subr.mxu0 0.0
    %453 = vmatpush1.msra.mxu0 0.0
    %454 = vmatprep.subr.mxu0 0.0
    %455 = vmatpush1.msra.mxu0 0.0
    %456 = vmatprep.subr.mxu0 0.0
    %457 = vmatpush1.msra.mxu0 0.0
    %458 = vmatprep.subr.mxu0 0.0
    %459 = vmatpush1.msra.mxu0 0.0
    %460 = vmatprep.subr.mxu0 0.0
    %461 = vmatpush1.msra.mxu0 0.0
    %462 = vmatprep.subr.mxu0 0.0
    %463 = vmatpush1.msra.mxu0 0.0
    %464 = vmatprep.subr.mxu0 0.0
    %465 = vmatpush1.msra.mxu0 0.0
    %466 = vmatprep.subr.mxu0 0.0
    %467 = vmatpush1.msra.mxu0 0.0
    %468 = vmatprep.subr.mxu0 0.0
    %469 = vmatpush1.msra.mxu0 0.0
    %470 = vmatprep.subr.mxu0 0.0
    %471 = vmatpush1.msra.mxu0 0.0
    %472 = vmatprep.subr.mxu0 0.0
    %473 = vmatpush1.msra.mxu0 0.0
    %474 = vmatprep.subr.mxu0 0.0
    %475 = vmatpush1.msra.mxu0 0.0
    %476 = vmatprep.mubr.f32.mxu0 0.0
    %477 = vmatmul.mubr.f32.gmra.mrb[0].mxu0 %v135
    %v478 = vpop.f32.mrb[0].mxu0
    %v479 = vadd.f32 0.0, %v478
    %v480 = vpop.f32.mrb[0].mxu0
    %481 = vmatprep.mubr.f32.mxu0 0.0
    %482 = vmatmul.mubr.f32.gmra.mrb[0].mxu0 %v136
    %v483 = vpop.f32.mrb[0].mxu0
    %v484 = vadd.f32 0.0, %v483
    %v485 = vpop.f32.mrb[0].mxu0
    %486 = vdwg.mxu0
    %v487 = vld [vmem:[#allocation10] sm:$0xff]
    %v488 = vld [vmem:[#allocation10 + $0x8] sm:$0xff]
    %v489 = vld [vmem:[#allocation10 + $0x10] sm:$0xff]
    %v490 = vld [vmem:[#allocation10 + $0x18] sm:$0xff]
    %v491 = vld [vmem:[#allocation10 + $0x20] sm:$0xff]
    %v492 = vld [vmem:[#allocation10 + $0x28] sm:$0xff]
    %v493 = vld [vmem:[#allocation10 + $0x30] sm:$0xff]
    %v494 = vld [vmem:[#allocation10 + $0x38] sm:$0xff]
    %v495 = vld [vmem:[#allocation10 + $0x40] sm:$0xff]
    %v496 = vld [vmem:[#allocation10 + $0x48] sm:$0xff]
    %v497 = vld [vmem:[#allocation10 + $0x50] sm:$0xff]
    %v498 = vld [vmem:[#allocation10 + $0x58] sm:$0xff]
    %v499 = vld [vmem:[#allocation10 + $0x60] sm:$0xff]
    %v500 = vld [vmem:[#allocation10 + $0x68] sm:$0xff]
    %v501 = vld [vmem:[#allocation10 + $0x70] sm:$0xff]
    %v502 = vld [vmem:[#allocation10 + $0x78] sm:$0xff]
    %503 = vmatprep.subr.mxu0 0.0
    %504 = vmatpush1.msra.mxu0 %v487
    %505 = vmatprep.subr.mxu0 0.0
    %506 = vmatpush1.msra.mxu0 %v488
    %507 = vmatprep.subr.mxu0 0.0
    %508 = vmatpush1.msra.mxu0 %v489
    %509 = vmatprep.subr.mxu0 0.0
    %510 = vmatpush1.msra.mxu0 %v490
    %511 = vmatprep.subr.mxu0 0.0
    %512 = vmatpush1.msra.mxu0 %v491
    %513 = vmatprep.subr.mxu0 0.0
    %514 = vmatpush1.msra.mxu0 %v492
    %515 = vmatprep.subr.mxu0 0.0
    %516 = vmatpush1.msra.mxu0 %v493
    %517 = vmatprep.subr.mxu0 0.0
    %518 = vmatpush1.msra.mxu0 %v494
    %519 = vmatprep.subr.mxu0 0.0
    %520 = vmatpush1.msra.mxu0 %v495
    %521 = vmatprep.subr.mxu0 0.0
    %522 = vmatpush1.msra.mxu0 %v496
    %523 = vmatprep.subr.mxu0 0.0
    %524 = vmatpush1.msra.mxu0 %v497
    %525 = vmatprep.subr.mxu0 0.0
    %526 = vmatpush1.msra.mxu0 %v498
    %527 = vmatprep.subr.mxu0 0.0
    %528 = vmatpush1.msra.mxu0 %v499
    %529 = vmatprep.subr.mxu0 0.0
    %530 = vmatpush1.msra.mxu0 %v500
    %531 = vmatprep.subr.mxu0 0.0
    %532 = vmatpush1.msra.mxu0 %v501
    %533 = vmatprep.subr.mxu0 0.0
    %534 = vmatpush1.msra.mxu0 %v502
    %535 = vmatprep.subr.mxu0 0.0
    %536 = vmatpush1.msra.mxu0 0.0
    %537 = vmatprep.subr.mxu0 0.0
    %538 = vmatpush1.msra.mxu0 0.0
    %539 = vmatprep.subr.mxu0 0.0
    %540 = vmatpush1.msra.mxu0 0.0
    %541 = vmatprep.subr.mxu0 0.0
    %542 = vmatpush1.msra.mxu0 0.0
    %543 = vmatprep.subr.mxu0 0.0
    %544 = vmatpush1.msra.mxu0 0.0
    %545 = vmatprep.subr.mxu0 0.0
    %546 = vmatpush1.msra.mxu0 0.0
    %547 = vmatprep.subr.mxu0 0.0
    %548 = vmatpush1.msra.mxu0 0.0
    %549 = vmatprep.subr.mxu0 0.0
    %550 = vmatpush1.msra.mxu0 0.0
    %551 = vmatprep.subr.mxu0 0.0
    %552 = vmatpush1.msra.mxu0 0.0
    %553 = vmatprep.subr.mxu0 0.0
    %554 = vmatpush1.msra.mxu0 0.0
    %555 = vmatprep.subr.mxu0 0.0
    %556 = vmatpush1.msra.mxu0 0.0
    %557 = vmatprep.subr.mxu0 0.0
    %558 = vmatpush1.msra.mxu0 0.0
    %559 = vmatprep.subr.mxu0 0.0
    %560 = vmatpush1.msra.mxu0 0.0
    %561 = vmatprep.subr.mxu0 0.0
    %562 = vmatpush1.msra.mxu0 0.0
    %563 = vmatprep.subr.mxu0 0.0
    %564 = vmatpush1.msra.mxu0 0.0
    %565 = vmatprep.subr.mxu0 0.0
    %566 = vmatpush1.msra.mxu0 0.0
    %567 = vmatprep.mubr.f32.mxu0 0.0
    %568 = vmatmul.mubr.f32.gmra.mrb[0].mxu0 %v479
    %v569 = vpop.f32.mrb[0].mxu0
    %v570 = vadd.f32 0.0, %v569
    %v571 = vpop.f32.mrb[0].mxu0
    %572 = vmatprep.mubr.f32.mxu0 0.0
    %573 = vmatmul.mubr.f32.gmra.mrb[0].mxu0 %v484
    %v574 = vpop.f32.mrb[0].mxu0
    %v575 = vadd.f32 0.0, %v574
    %v576 = vpop.f32.mrb[0].mxu0
    %577 = vdwg.mxu0
    %vm578 = vcmp.lt.s32.totalorder %v124, 24
    %v579 = vsel %vm578, 1, 0
    %vm580 = vcmp.eq.s32.totalorder %v579, 1
    %v581 = vsel %vm580, %v570, -inf
    %v582 = vsel %vm580, %v575, -inf
    %583 = vmax.xlane.f32.xlu0 %v581
    %v584 = vpop.xlane.xlu0 %583
    %585 = vmax.xlane.f32.xlu0 %v582
    %v586 = vpop.xlane.xlu0 %585
    %v587 = vsub.f32 %v581, %v584
    %v588 = vsub.f32 %v582, %v586
    %v589 = vmul.f32 %v587, 1.442695
    %v590 = vpow.pop %v589
    %v591 = vmul.f32 %v588, 1.442695
    %v592 = vpow.pop %v591
    %593 = vadd.xlane.f32.xlu0 %v590
    %v594 = vpop.xlane.xlu0 %593
    %595 = vadd.xlane.f32.xlu0 %v592
    %v596 = vpop.xlane.xlu0 %595
    %v597 = vrcp.pop %v594
    %v598 = vrcp.pop %v596
    %v599 = vmul.f32 %v594, %v597
    %v600 = vmul.f32 %v596, %v598
    %v601 = vsub.f32 2.0, %v599
    %v602 = vsub.f32 2.0, %v600
    %v603 = vmul.f32 %v597, %v601
    %v604 = vmul.f32 %v598, %v602
    %v605 = vmul.f32 %v590, %v603
    %v606 = vmul.f32 %v592, %v604
    %v607 = vlog2.pop %v594
    %v608 = vmul.f32 %v607, 0.6931472
    %v609 = vlog2.pop %v596
    %v610 = vmul.f32 %v609, 0.6931472
    %v611 = vsub.f32 %v587, %v608
    %v612 = vsub.f32 %v588, %v610
    %v613 = vld [vmem:[#allocation11] sm:$0xff]
    %v614 = vld [vmem:[#allocation11 + $0x8] sm:$0xff]
    %v615 = vld [vmem:[#allocation11 + $0x10] sm:$0xff]
    %v616 = vld [vmem:[#allocation11 + $0x18] sm:$0xff]
    %v617 = vld [vmem:[#allocation11 + $0x20] sm:$0xff]
    %v618 = vld [vmem:[#allocation11 + $0x28] sm:$0xff]
    %v619 = vld [vmem:[#allocation11 + $0x30] sm:$0xff]
    %v620 = vld [vmem:[#allocation11 + $0x38] sm:$0xff]
    %v621 = vld [vmem:[#allocation11 + $0x40] sm:$0xff]
    %v622 = vld [vmem:[#allocation11 + $0x48] sm:$0xff]
    %v623 = vld [vmem:[#allocation11 + $0x50] sm:$0xff]
    %v624 = vld [vmem:[#allocation11 + $0x58] sm:$0xff]
    %v625 = vld [vmem:[#allocation11 + $0x60] sm:$0xff]
    %v626 = vld [vmem:[#allocation11 + $0x68] sm:$0xff]
    %v627 = vld [vmem:[#allocation11 + $0x70] sm:$0xff]
    %v628 = vld [vmem:[#allocation11 + $0x78] sm:$0xff]
    %629 = vmatprep.subr.mxu0 0.0
    %630 = vmatpush1.msra.mxu0 %v613
    %631 = vmatprep.subr.mxu0 0.0
    %632 = vmatpush1.msra.mxu0 %v614
    %633 = vmatprep.subr.mxu0 0.0
    %634 = vmatpush1.msra.mxu0 %v615
    %635 = vmatprep.subr.mxu0 0.0
    %636 = vmatpush1.msra.mxu0 %v616
    %637 = vmatprep.subr.mxu0 0.0
    %638 = vmatpush1.msra.mxu0 %v617
    %639 = vmatprep.subr.mxu0 0.0
    %640 = vmatpush1.msra.mxu0 %v618
    %641 = vmatprep.subr.mxu0 0.0
    %642 = vmatpush1.msra.mxu0 %v619
    %643 = vmatprep.subr.mxu0 0.0
    %644 = vmatpush1.msra.mxu0 %v620
    %645 = vmatprep.subr.mxu0 0.0
    %646 = vmatpush1.msra.mxu0 %v621
    %647 = vmatprep.subr.mxu0 0.0
    %648 = vmatpush1.msra.mxu0 %v622
    %649 = vmatprep.subr.mxu0 0.0
    %650 = vmatpush1.msra.mxu0 %v623
    %651 = vmatprep.subr.mxu0 0.0
    %652 = vmatpush1.msra.mxu0 %v624
    %653 = vmatprep.subr.mxu0 0.0
    %654 = vmatpush1.msra.mxu0 %v625
    %655 = vmatprep.subr.mxu0 0.0
    %656 = vmatpush1.msra.mxu0 %v626
    %657 = vmatprep.subr.mxu0 0.0
    %658 = vmatpush1.msra.mxu0 %v627
    %659 = vmatprep.subr.mxu0 0.0
    %660 = vmatpush1.msra.mxu0 %v628
    %661 = vmatprep.subr.mxu0 0.0
    %662 = vmatpush1.msra.mxu0 0.0
    %663 = vmatprep.subr.mxu0 0.0
    %664 = vmatpush1.msra.mxu0 0.0
    %665 = vmatprep.subr.mxu0 0.0
    %666 = vmatpush1.msra.mxu0 0.0
    %667 = vmatprep.subr.mxu0 0.0
    %668 = vmatpush1.msra.mxu0 0.0
    %669 = vmatprep.subr.mxu0 0.0
    %670 = vmatpush1.msra.mxu0 0.0
    %671 = vmatprep.subr.mxu0 0.0
    %672 = vmatpush1.msra.mxu0 0.0
    %673 = vmatprep.subr.mxu0 0.0
    %674 = vmatpush1.msra.mxu0 0.0
    %675 = vmatprep.subr.mxu0 0.0
    %676 = vmatpush1.msra.mxu0 0.0
    %677 = vmatprep.subr.mxu0 0.0
    %678 = vmatpush1.msra.mxu0 0.0
    %679 = vmatprep.subr.mxu0 0.0
    %680 = vmatpush1.msra.mxu0 0.0
    %681 = vmatprep.subr.mxu0 0.0
    %682 = vmatpush1.msra.mxu0 0.0
    %683 = vmatprep.subr.mxu0 0.0
    %684 = vmatpush1.msra.mxu0 0.0
    %685 = vmatprep.subr.mxu0 0.0
    %686 = vmatpush1.msra.mxu0 0.0
    %687 = vmatprep.subr.mxu0 0.0
    %688 = vmatpush1.msra.mxu0 0.0
    %689 = vmatprep.subr.mxu0 0.0
    %690 = vmatpush1.msra.mxu0 0.0
    %691 = vmatprep.subr.mxu0 0.0
    %692 = vmatpush1.msra.mxu0 0.0
    %693 = vmatprep.mubr.f32.mxu0 0.0
    %694 = vmatmul.mubr.f32.gmra.mrb[0].mxu0 %v605
    %v695 = vpop.f32.mrb[0].mxu0
    %v696 = vadd.f32 0.0, %v695
    %v697 = vpop.f32.mrb[0].mxu0
    %698 = vmatprep.mubr.f32.mxu0 0.0
    %699 = vmatmul.mubr.f32.gmra.mrb[0].mxu0 %v606
    %v700 = vpop.f32.mrb[0].mxu0
    %v701 = vadd.f32 0.0, %v700
    %v702 = vpop.f32.mrb[0].mxu0
    %703 = vdwg.mxu0
    %v704 = vsel %vm580, %v611, 0.0
    %v705 = vsel %vm580, %v612, 0.0
    %v706 = vmul.f32 %v605, %v704
    %v707 = vmul.f32 %v606, %v705
    %v708 = vsel %vm376, %v706, 0.0
    %v709 = vsel %vm377, %v707, 0.0
    %v710 = vsel %vm376, %v605, 0.0
    %v711 = vsel %vm377, %v606, 0.0
    %v712 = vadd.f32 %v708, %v709
    %v713 = vrot.slane %v712, 4
    %v714 = vadd.f32 %v712, %v713
    %v715 = vrot.slane %v714, 2
    %v716 = vadd.f32 %v714, %v715
    %v717 = vrot.slane %v716, 1
    %v718 = vadd.f32 %v716, %v717
    %v719 = vadd.f32 %v710, %v711
    %v720 = vrot.slane %v719, 4
    %v721 = vadd.f32 %v719, %v720
    %v722 = vrot.slane %v721, 2
    %v723 = vadd.f32 %v721, %v722
    %v724 = vrot.slane %v723, 1
    %v725 = vadd.f32 %v723, %v724
    %726 = vmatprep.subr.mxu0 0.0
    %727 = vmatpush1.msra.mxu0 %v354
    %728 = vmatprep.subr.mxu0 0.0
    %729 = vmatpush1.msra.mxu0 %v355
    %730 = vmatprep.subr.mxu0 0.0
    %731 = vmatpush1.msra.mxu0 %v356
    %732 = vmatprep.subr.mxu0 0.0
    %733 = vmatpush1.msra.mxu0 %v357
    %734 = vmatprep.subr.mxu0 0.0
    %735 = vmatpush1.msra.mxu0 %v358
    %736 = vmatprep.subr.mxu0 0.0
    %737 = vmatpush1.msra.mxu0 %v359
    %738 = vmatprep.subr.mxu0 0.0
    %739 = vmatpush1.msra.mxu0 %v360
    %740 = vmatprep.subr.mxu0 0.0
    %741 = vmatpush1.msra.mxu0 %v361
    %742 = vmatprep.subr.mxu0 0.0
    %743 = vmatpush1.msra.mxu0 %v362
    %744 = vmatprep.subr.mxu0 0.0
    %745 = vmatpush1.msra.mxu0 %v363
    %746 = vmatprep.subr.mxu0 0.0
    %747 = vmatpush1.msra.mxu0 %v364
    %748 = vmatprep.subr.mxu0 0.0
    %749 = vmatpush1.msra.mxu0 %v365
    %750 = vmatprep.subr.mxu0 0.0
    %751 = vmatpush1.msra.mxu0 %v366
    %752 = vmatprep.subr.mxu0 0.0
    %753 = vmatpush1.msra.mxu0 %v367
    %754 = vmatprep.subr.mxu0 0.0
    %755 = vmatpush1.msra.mxu0 %v368
    %756 = vmatprep.subr.mxu0 0.0
    %757 = vmatpush1.msra.mxu0 %v369
    %758 = vmatprep.subr.mxu0 0.0
    %759 = vmatpush1.msra.mxu0 0.0
    %760 = vmatprep.subr.mxu0 0.0
    %761 = vmatpush1.msra.mxu0 0.0
    %762 = vmatprep.subr.mxu0 0.0
    %763 = vmatpush1.msra.mxu0 0.0
    %764 = vmatprep.subr.mxu0 0.0
    %765 = vmatpush1.msra.mxu0 0.0
    %766 = vmatprep.subr.mxu0 0.0
    %767 = vmatpush1.msra.mxu0 0.0
    %768 = vmatprep.subr.mxu0 0.0
    %769 = vmatpush1.msra.mxu0 0.0
    %770 = vmatprep.subr.mxu0 0.0
    %771 = vmatpush1.msra.mxu0 0.0
    %772 = vmatprep.subr.mxu0 0.0
    %773 = vmatpush1.msra.mxu0 0.0
    %774 = vmatprep.subr.mxu0 0.0
    %775 = vmatpush1.msra.mxu0 0.0
    %776 = vmatprep.subr.mxu0 0.0
    %777 = vmatpush1.msra.mxu0 0.0
    %778 = vmatprep.subr.mxu0 0.0
    %779 = vmatpush1.msra.mxu0 0.0
    %780 = vmatprep.subr.mxu0 0.0
    %781 = vmatpush1.msra.mxu0 0.0
    %782 = vmatprep.subr.mxu0 0.0
    %783 = vmatpush1.msra.mxu0 0.0
    %784 = vmatprep.subr.mxu0 0.0
    %785 = vmatpush1.msra.mxu0 0.0
    %786 = vmatprep.subr.mxu0 0.0
    %787 = vmatpush1.msra.mxu0 0.0
    %788 = vmatprep.subr.mxu0 0.0
    %789 = vmatpush1.msra.mxu0 0.0
    %790 = vmatprep.mubr.f32.mxu0 0.0
    %791 = vmatmul.mubr.f32.gmra.mrb[0].mxu0 %v346
    %v792 = vpop.f32.mrb[0].mxu0
    %v793 = vadd.f32 %v696, %v792
    %v794 = vpop.f32.mrb[0].mxu0
    %795 = vmatprep.mubr.f32.mxu0 0.0
    %796 = vmatmul.mubr.f32.gmra.mrb[0].mxu0 %v347
    %v797 = vpop.f32.mrb[0].mxu0
    %v798 = vadd.f32 %v701, %v797
    %v799 = vpop.f32.mrb[0].mxu0
    %800 = vdwg.mxu0
    %801 = vst [vmem:[#allocation13] sm:$0xff] %v793
    %802 = vst [vmem:[#allocation13 + $0x8] sm:$0xff] %v798
    %vm803 = vcmask 1040384
    %v804 = vsel %vm803, %v388, %v395
    %vm805 = vcmask 1041408
    %v806 = vsel %vm805, %v804, %v718
    %vm807 = vcmask 1042432
    %v808 = vsel %vm807, %v806, %v725
    %809 = vst [vmem:[#allocation14] sm:$0xf] %v808
    // Predicated region
    $region54: #{tpu_custom_call.1} parent=1 // pred_check
      _
    $region55: #{tpu_custom_call.1} parent=1 // pred_check_branch
      %811 = sbr.rel (0) target = $region57
    $region56: #{tpu_custom_call.1} parent=1 // pred_region
      %s813 = ssub.s32 256, 256
      %814 = vsyncadd [#allocation4], %s813
      %s815 = sshll.u32 [#allocation13], 4
      %s816 = int_to_ptr.vmem [resolvable:$true] %s815
      %821 = dma.vmem_to_hbm [thread:$0]  %s816, 256, %s7, [#allocation4], 128, 128, 8
    $region57: #{tpu_custom_call.1} parent=1 // pred_fallthru
      _
    // Predicated region
    $region58: #{tpu_custom_call.1} parent=1 // pred_check
      _
    $region59: #{tpu_custom_call.1} parent=1 // pred_check_branch
      %823 = sbr.rel (0) target = $region61
    $region60: #{tpu_custom_call.1} parent=1 // pred_region
      %s825 = ssub.s32 64, 64
      %826 = vsyncadd [#allocation15], %s825
      %s828 = sshll.u32 [#allocation14], 4
      %s829 = int_to_ptr.vmem [resolvable:$true] %s828
      %831 = dma.vmem_to_hbm [thread:$0]  %s829, 64, %s8, [#allocation15]
    $region61: #{tpu_custom_call.1} parent=1 // pred_fallthru
      _
    // Predicated region
    $region62: #{tpu_custom_call.1} parent=1 // pred_check
      _
    $region63: #{tpu_custom_call.1} parent=1 // pred_check_branch
      %833 = sbr.rel (0) target = $region65
    $region64: #{tpu_custom_call.1} parent=1 // pred_region
      %834 = dma.done [#allocation4], 256
    $region65: #{tpu_custom_call.1} parent=1 // pred_fallthru
      _
    // Predicated region
    $region66: #{tpu_custom_call.1} parent=1 // pred_check
      _
    $region67: #{tpu_custom_call.1} parent=1 // pred_check_branch
      %836 = sbr.rel (0) target = $region69
    $region68: #{tpu_custom_call.1} parent=1 // pred_region
      %837 = dma.done [#allocation15], 64
    $region69: #{tpu_custom_call.1} parent=1 // pred_fallthru
      _
    %838 = vsyncpa [#allocation3], 1
    %839 = vsyncpa [#allocation6], 1
    %840 = vsyncpa [#allocation9], 1
    %841 = vsyncpa [#allocation12], 1
    %842 = vsyncpa [#allocation4], 1
    %843 = vsyncpa [#allocation15], 1

</llo_original>
